<compile_context>
chip_gen: v7x
topology: tpu7x:2x2x1
jax: 0.10.0
libtpu: 0.0.40
codegen_flags: <defaults>
</compile_context>

<pallas_src>
import functools

import jax
import jax.numpy as jnp
from jax.experimental import pallas as pl
from jax.experimental.pallas import tpu as pltpu


def mlp_kernel(x_ref, w1_ref, b1_ref, w2_ref, b2_ref, o_ref):
    # x_ref : (TM, 128)   G samples per row, IN features each (lane-dense)
    # w1_ref: (128, G*H)  kron(I_G, W1^T)  -- block-diagonal layer-1 weight
    # b1_ref: (1, G*H)    b1 tiled G times
    # w2_ref: (G*H, G)    kron(I_G, W2^T)  -- block-diagonal layer-2 weight
    # b2_ref: (1, 1)      scalar bias in SMEM
    # o_ref : (TM, G)     sample (m, g) = batch row m*G + g
    h = jnp.dot(x_ref[...], w1_ref[...],
                preferred_element_type=jnp.float32)            # (TM, G*H) MXU
    h = jnp.maximum(h + b1_ref[...], 0.0)                      # bias + ReLU (VPU)
    z = jnp.dot(h, w2_ref[...],
                preferred_element_type=jnp.float32)            # (TM, G)   MXU
    z = z + b2_ref[0, 0]                                       # scalar bias
    # sigmoid(z) = 1 / (1 + exp(-z)); exp + approx reciprocal both on the EUP.
    o_ref[...] = pl.reciprocal(1.0 + jnp.exp(-z),
                               approx=True).astype(o_ref.dtype)


@functools.partial(jax.jit, static_argnames=("tm",))
def neural_net_forward(x, w1, b1, w2, b2, *, tm=2048):
    """Forward pass of NeuralNet.

    x : (B, IN) float32
    w1: (H, IN), b1: (H,)   -- PyTorch nn.Linear(input_size, hidden_size) layout
    w2: (1, H), b2: (1,)    -- PyTorch nn.Linear(hidden_size, 1) layout
    returns (B, 1) float32
    """
    B, IN = x.shape
    H = w1.shape[0]
    assert 128 % IN == 0, "TODO(synk): general IN needs the K-tiled path"
    G = 128 // IN           # batch rows folded per 128-lane row
    GH = G * H

    # ---- tile sizing over folded batch rows -------------------------------
    M = pl.cdiv(B, G)                       # folded rows of x needed
    tm = max(1, min(tm, M))
    if M >= 16:
        # keep >= 2 grid steps so "parallel" can use both v7x TensorCores
        tm = min(tm, ((pl.cdiv(M, 2) + 7) // 8) * 8)
    if tm >= 8:
        tm = (tm // 8) * 8                  # sublane granularity
    else:
        tm = M                              # tiny M: single full-extent block
    n_blocks = pl.cdiv(M, tm)
    m_pad = n_blocks * tm
    b_pad = m_pad * G

    # ---- layout plumbing: free reshape, pad only the ragged tail ----------
    if b_pad != B:
        x = jnp.pad(x, ((0, b_pad - B), (0, 0)))
    x_fold = x.reshape(m_pad, G * IN)                       # (M_pad, 128), bitcast

    eye_g = jnp.eye(G, dtype=w1.dtype)
    w1_big = jnp.kron(eye_g, w1.T)                          # (128, G*H)
    b1_big = jnp.tile(b1, G).reshape(1, GH)                 # (1, G*H)
    w2_big = jnp.kron(eye_g, w2.reshape(H, 1))              # (G*H, G)
    b2c = b2.reshape(1, 1)

    # ---- VMEM budget (explicit: v5e scoped default is 16 MiB, v7x phys 64) -
    vmem_bytes = (
        2 * tm * 128 * 4                    # double-buffered x tiles
        + 2 * tm * 128 * 4                  # double-buffered (lane-padded) out tiles
        + 2 * (128 * GH + GH * 128 + GH) * 4  # resident expanded weights (x2 slack)
        + 3 * tm * GH * 4                   # layer-1 intermediate h + slack
    )
    vmem_limit = int(min(max(vmem_bytes, 32 * 2**20), 48 * 2**20))

    out = pl.pallas_call(
        mlp_kernel,
        out_shape=jax.ShapeDtypeStruct((m_pad, G), jnp.float32),
        grid=(n_blocks,),
        in_specs=[
            pl.BlockSpec((tm, G * IN), lambda i: (i, 0)),   # x tile, pipelined
            pl.BlockSpec((G * IN, GH), lambda i: (0, 0)),   # weights: VMEM-resident
            pl.BlockSpec((1, GH), lambda i: (0, 0)),
            pl.BlockSpec((GH, G), lambda i: (0, 0)),
            pl.BlockSpec(memory_space=pltpu.MemorySpace.SMEM),  # scalar b2
        ],
        out_specs=pl.BlockSpec((tm, G), lambda i: (i, 0)),
        compiler_params=pltpu.CompilerParams(
            dimension_semantics=("parallel",),              # no cross-step reduction
            vmem_limit_bytes=vmem_limit,
        ),
        cost_estimate=pl.CostEstimate(
            flops=2 * m_pad * 128 * GH + 2 * m_pad * GH * G,
            transcendentals=2 * m_pad * G,                  # exp + rcp per sample
            bytes_accessed=4 * (m_pad * 128 + m_pad * G
                                + 128 * GH + GH * G + GH + 1),
        ),
    )(x_fold, w1_big, b1_big, w2_big, b2c)

    return out.reshape(b_pad, 1)[:B]


def init_params(key, input_size, hidden_size):
    """Deterministic synthetic parameters in PyTorch nn.Linear layouts."""
    k1, k2, k3, k4 = jax.random.split(key, 4)
    w1 = jax.random.normal(k1, (hidden_size, input_size), jnp.float32) * 0.1
    b1 = jax.random.normal(k2, (hidden_size,), jnp.float32) * 0.1
    w2 = jax.random.normal(k3, (1, hidden_size), jnp.float32) * 0.1
    b2 = jax.random.normal(k4, (1,), jnp.float32) * 0.1
    return w1, b1, w2, b2


if __name__ == "__main__":
    key = jax.random.PRNGKey(0)
    batch, input_size, hidden_size = 8, 4, 32

    kx, kp = jax.random.split(key)
    x = jax.random.normal(kx, (batch, input_size), jnp.float32)
    w1, b1, w2, b2 = init_params(kp, input_size, hidden_size)

    out = neural_net_forward(x, w1, b1, w2, b2)
    out = jax.block_until_ready(out)

    # Pure-JAX reference (exact sigmoid); kernel uses the EUP approx reciprocal,
    # so allow a slightly looser tolerance.
    ref = jax.nn.sigmoid(jnp.maximum(x @ w1.T + b1, 0.0) @ w2.T + b2)
    assert out.shape == (batch, 1)
    assert jnp.allclose(out, ref, atol=2e-3, rtol=2e-3)

    print("KERNEL_OK")
</pallas_src>

<mosaic_0001>
module attributes {stable_mosaic.version = 11 : i64} {
  func.func @mlp_kernel(%arg0: i32, %arg1: memref<1x128xf32, #tpu.memory_space<vmem>>, %arg2: memref<128x1024xf32, #tpu.memory_space<vmem>>, %arg3: memref<1x1024xf32, #tpu.memory_space<vmem>>, %arg4: memref<1024x32xf32, #tpu.memory_space<vmem>>, %arg5: memref<1x1xf32, #tpu.memory_space<smem>>, %arg6: memref<1x32xf32, #tpu.memory_space<vmem>>) attributes {dimension_semantics = [#tpu.dimension_semantics<parallel>], iteration_bounds = array<i64: 1>, scalar_prefetch = 0 : i64, scratch_operands = 0 : i64, tpu.core_type = #tpu.core_type<tc>, window_params = [{transform_indices = @transform_0, window_bounds = array<i64: 1, 128>}, {pipeline_mode = #tpu.pipeline_mode<synchronous>, transform_indices = @transform_1, window_bounds = array<i64: 128, 1024>}, {pipeline_mode = #tpu.pipeline_mode<synchronous>, transform_indices = @transform_2, window_bounds = array<i64: 1, 1024>}, {pipeline_mode = #tpu.pipeline_mode<synchronous>, transform_indices = @transform_3, window_bounds = array<i64: 1024, 32>}, {transform_indices = @transform_4, window_bounds = array<i64: 1, 1>}, {transform_indices = @transform_5, window_bounds = array<i64: 1, 32>}]} {
    %c0 = arith.constant 0 : index
    %c0_0 = arith.constant 0 : index
    %0 = vector.load %arg1[%c0, %c0_0] : memref<1x128xf32, #tpu.memory_space<vmem>>, vector<1x128xf32>
    %c0_1 = arith.constant 0 : index
    %c0_2 = arith.constant 0 : index
    %1 = vector.load %arg2[%c0_1, %c0_2] : memref<128x1024xf32, #tpu.memory_space<vmem>>, vector<128x1024xf32>
    %cst = arith.constant dense<0.000000e+00> : vector<1x1024xf32>
    %2 = tpu.matmul %0, %1, %cst {dimension_numbers = #tpu.dot_dimension_numbers<[1], [0], [0], [1], [0, 0, 1, 1], [], []>} : vector<1x128xf32>, vector<128x1024xf32>, vector<1x1024xf32> -> vector<1x1024xf32>
    %c0_3 = arith.constant 0 : index
    %c0_4 = arith.constant 0 : index
    %3 = vector.load %arg3[%c0_3, %c0_4] : memref<1x1024xf32, #tpu.memory_space<vmem>>, vector<1x1024xf32>
    %4 = arith.addf %2, %3 : vector<1x1024xf32>
    %cst_5 = arith.constant 0.000000e+00 : f32
    %5 = vector.broadcast %cst_5 : f32 to vector<1x1024xf32>
    %6 = arith.maximumf %4, %5 : vector<1x1024xf32>
    %c0_6 = arith.constant 0 : index
    %c0_7 = arith.constant 0 : index
    %7 = vector.load %arg4[%c0_6, %c0_7] : memref<1024x32xf32, #tpu.memory_space<vmem>>, vector<1024x32xf32>
    %cst_8 = arith.constant dense<0.000000e+00> : vector<1x32xf32>
    %8 = tpu.matmul %6, %7, %cst_8 {dimension_numbers = #tpu.dot_dimension_numbers<[1], [0], [0], [1], [0, 0, 1, 1], [], []>} : vector<1x1024xf32>, vector<1024x32xf32>, vector<1x32xf32> -> vector<1x32xf32>
    %c0_9 = arith.constant 0 : index
    %c0_10 = arith.constant 0 : index
    %9 = memref.load %arg5[%c0_9, %c0_10] : memref<1x1xf32, #tpu.memory_space<smem>>
    %10 = vector.broadcast %9 : f32 to vector<1x32xf32>
    %11 = arith.addf %8, %10 : vector<1x32xf32>
    %cst_11 = arith.constant 0.000000e+00 : f32
    %12 = vector.broadcast %cst_11 : f32 to vector<1x32xf32>
    %13 = arith.subf %12, %11 : vector<1x32xf32>
    %14 = math.exp %13 : vector<1x32xf32>
    %cst_12 = arith.constant 1.000000e+00 : f32
    %15 = vector.broadcast %cst_12 : f32 to vector<1x32xf32>
    %16 = arith.addf %15, %14 : vector<1x32xf32>
    %17 = tpu.reciprocal %16 {approx = true} : vector<1x32xf32> -> vector<1x32xf32>
    %c0_13 = arith.constant 0 : index
    %c0_14 = arith.constant 0 : index
    %18 = vector.load %arg6[%c0_13, %c0_14] : memref<1x32xf32, #tpu.memory_space<vmem>>, vector<1x32xf32>
    tpu.vector_store %arg6[%c0_13, %c0_14], %17 {strides = array<i32>} : memref<1x32xf32, #tpu.memory_space<vmem>>, vector<1x32xf32>,
    return
  }
  func.func @transform_0(%arg0: i32) -> (i32, i32) {
    %c0_i32 = arith.constant 0 : i32
    %c0_i32_0 = arith.constant 0 : i32
    return %arg0, %c0_i32 : i32, i32
  }
  func.func @transform_1(%arg0: i32) -> (i32, i32) {
    %c0_i32 = arith.constant 0 : i32
    %c0_i32_0 = arith.constant 0 : i32
    %c0_i32_1 = arith.constant 0 : i32
    return %c0_i32, %c0_i32_0 : i32, i32
  }
  func.func @transform_2(%arg0: i32) -> (i32, i32) {
    %c0_i32 = arith.constant 0 : i32
    %c0_i32_0 = arith.constant 0 : i32
    %c0_i32_1 = arith.constant 0 : i32
    return %c0_i32, %c0_i32_0 : i32, i32
  }
  func.func @transform_3(%arg0: i32) -> (i32, i32) {
    %c0_i32 = arith.constant 0 : i32
    %c0_i32_0 = arith.constant 0 : i32
    %c0_i32_1 = arith.constant 0 : i32
    return %c0_i32, %c0_i32_0 : i32, i32
  }
  func.func @transform_4(%arg0: i32) -> (i32, i32) {
    %c0_i32 = arith.constant 0 : i32
    %c0_i32_0 = arith.constant 0 : i32
    %c0_i32_1 = arith.constant 0 : i32
    return %c0_i32, %c0_i32_0 : i32, i32
  }
  func.func @transform_5(%arg0: i32) -> (i32, i32) {
    %c0_i32 = arith.constant 0 : i32
    %c0_i32_0 = arith.constant 0 : i32
    return %arg0, %c0_i32 : i32, i32
  }
}

</mosaic_0001>

<llo_original>
// kernel: tile.9
$region0: #{tile.9}
  %s0 = inlined_call_operand.vmem [shape: f32[32,32], index: 0, kind: input, shape index: {}]
  %s1 = inlined_call_operand.vmem [shape: f32[1,1024], index: 1, kind: output, shape index: {}]
  $region1: #{tile.9} parent=0
    #allocation0 [shape = 'u8[32768]{0}', space=vmem, size = 0x8000, scoped, tag = 'scoped mem for output reshape']
    %v2 = vld [vmem:[%s0] ss:$4 sm:$0xff]
    %vm3 = vcmask 261120
    %4 = vst.msk [vmem:[#allocation0] ss:$8 sm:$0xf] %vm3, %v2
    %5 = vst.msk [vmem:[#allocation0] ss:$8 sm:$0xf0] %vm3, %v2
    %s6 = scalar_lea.vmem %s0, 3
    %v7 = vld [vmem:[%s6] ss:$4 sm:$0xff]
    %8 = vrot.lane.b32.xlu0 %v7, 96
    %v9 = vpop.permute.xlu0 %8
    %vm10 = vcmask 1048320
    %11 = vst.msk [vmem:[#allocation0] ss:$8 sm:$0xf] %vm10, %v9
    %12 = vst.msk [vmem:[#allocation0] ss:$8 sm:$0xf0] %vm10, %v9
    %s13 = scalar_lea.vmem %s0, 2
    %v14 = vld [vmem:[%s13] ss:$4 sm:$0xff]
    %15 = vrot.lane.b32.xlu0 %v14, 64
    %v16 = vpop.permute.xlu0 %15
    %vm17 = vcmask 785920
    %18 = vst.msk [vmem:[#allocation0] ss:$8 sm:$0xf] %vm17, %v16
    %19 = vst.msk [vmem:[#allocation0] ss:$8 sm:$0xf0] %vm17, %v16
    %s20 = scalar_lea.vmem %s0, 1
    %v21 = vld [vmem:[%s20] ss:$4 sm:$0xff]
    %22 = vrot.lane.b32.xlu0 %v21, 32
    %v23 = vpop.permute.xlu0 %22
    %vm24 = vcmask 523520
    %25 = vst.msk [vmem:[#allocation0] ss:$8 sm:$0xf] %vm24, %v23
    %26 = vst.msk [vmem:[#allocation0] ss:$8 sm:$0xf0] %vm24, %v23
    %s28 = sshllo.u32 0, 1
    %v30 = vld [vmem:[#allocation0] sm:%s28]
    %s31 = sshllo.u32 0, 1
    %32 = vst [vmem:[%s1] sm:%s31] %v30
    %s33 = scalar_lea.vmem [#allocation0], 8
    %v34 = vld [vmem:[%s33] sm:%s28]
    %s35 = sshllo.u32 0, 1
    %s36 = scalar_lea.vmem %s1, 1
    %37 = vst [vmem:[%s36] sm:%s35] %v34
    %s38 = scalar_lea.vmem [#allocation0], 16
    %v39 = vld [vmem:[%s38] sm:%s28]
    %s40 = sshllo.u32 0, 1
    %s41 = smul.addr 1, 2
    %s42 = scalar_lea.vmem %s1, %s41
    %43 = vst [vmem:[%s42] sm:%s40] %v39
    %s44 = scalar_lea.vmem [#allocation0], 24
    %v45 = vld [vmem:[%s44] sm:%s28]
    %s46 = sshllo.u32 0, 1
    %s47 = smul.addr 1, 3
    %s48 = scalar_lea.vmem %s1, %s47
    %49 = vst [vmem:[%s48] sm:%s46] %v45
    %s50 = scalar_lea.vmem [#allocation0], 32
    %v51 = vld [vmem:[%s50] sm:%s28]
    %s52 = sshllo.u32 0, 1
    %s53 = smul.addr 1, 4
    %s54 = scalar_lea.vmem %s1, %s53
    %55 = vst [vmem:[%s54] sm:%s52] %v51
    %s56 = scalar_lea.vmem [#allocation0], 40
    %v57 = vld [vmem:[%s56] sm:%s28]
    %s58 = sshllo.u32 0, 1
    %s59 = smul.addr 1, 5
    %s60 = scalar_lea.vmem %s1, %s59
    %61 = vst [vmem:[%s60] sm:%s58] %v57
    %s62 = scalar_lea.vmem [#allocation0], 48
    %v63 = vld [vmem:[%s62] sm:%s28]
    %s64 = sshllo.u32 0, 1
    %s65 = smul.addr 1, 6
    %s66 = scalar_lea.vmem %s1, %s65
    %67 = vst [vmem:[%s66] sm:%s64] %v63
    %s68 = scalar_lea.vmem [#allocation0], 56
    %v69 = vld [vmem:[%s68] sm:%s28]
    %s70 = sshllo.u32 0, 1
    %s71 = smul.addr 1, 7
    %s72 = scalar_lea.vmem %s1, %s71
    %73 = vst [vmem:[%s72] sm:%s70] %v69

// kernel: neural_net_forward.1
$region0: #{neural_net_forward.1}
  #allocation0 [shape = 'u32[]', space=smem, size = 0x4, offset = 0x4, fixed_abs, tag = 'smem constant byte address 0x4 - core index']
  #allocation1 [shape = 'u32[144,128]{1,0:T(1,128)}', space=vmem, size = 0x12000, scoped, tag = 'internal scratch']
  #allocation2 [shape = 'f32[1,1]{1,0:T(1,128)S(6)}', space=smem, size = 0x200, scoped, tag = 'scoped memory for neural_net_forward.1']
  %s0 = inlined_call_operand.vmem [shape: f32[1,128], index: 0, kind: input, shape index: {}]
  %s1 = inlined_call_operand.vmem [shape: f32[128,1024], index: 1, kind: input, shape index: {}]
  %s2 = inlined_call_operand.vmem [shape: f32[1,1024], index: 2, kind: input, shape index: {}]
  %s3 = inlined_call_operand.vmem [shape: f32[1024,32], index: 3, kind: input, shape index: {}]
  %s4 = inlined_call_operand.<no memory space> [shape: f32[1,1], index: 4, kind: input, shape index: {}]
  %s5 = inlined_call_operand.vmem [shape: f32[1,32], index: 5, kind: output, shape index: {}]
  %s6 = sld [smem:[#allocation0]]
  $region30: #{neural_net_forward.1} parent=0
    _
  %s8 = ssub.s32 1, %s6
  %s9 = scalar_select 0, %s8, %s6
  %10 = sst [smem:[#allocation2]] %s4
  // Predicated region
  $region2: #{neural_net_forward.1} parent=0 // pred_check
    _
  $region3: #{neural_net_forward.1} parent=0 // pred_check_branch
    %12 = sbr.rel (0) target = $region5
  $region4: #{neural_net_forward.1} parent=0 // pred_region
    _
  $region5: #{neural_net_forward.1} parent=0 // pred_fallthru
    _
  // Predicated region
  $region6: #{neural_net_forward.1} parent=0 // pred_check
    _
  $region7: #{neural_net_forward.1} parent=0 // pred_check_branch
    %14 = sbr.rel (0) target = $region9
  $region8: #{neural_net_forward.1} parent=0 // pred_region
    _
  $region9: #{neural_net_forward.1} parent=0 // pred_fallthru
    _
  // Predicated region
  $region10: #{neural_net_forward.1} parent=0 // pred_check
    _
  $region11: #{neural_net_forward.1} parent=0 // pred_check_branch
    %16 = sbr.rel (0) target = $region13
  $region12: #{neural_net_forward.1} parent=0 // pred_region
    _
  $region13: #{neural_net_forward.1} parent=0 // pred_fallthru
    _
  // Predicated region
  $region14: #{neural_net_forward.1} parent=0 // pred_check
    _
  $region15: #{neural_net_forward.1} parent=0 // pred_check_branch
    %18 = sbr.rel (0) target = $region17
  $region16: #{neural_net_forward.1} parent=0 // pred_region
    _
  $region17: #{neural_net_forward.1} parent=0 // pred_fallthru
    _
  // Predicated region
  $region18: #{neural_net_forward.1} parent=0 // pred_check
    _
  $region19: #{neural_net_forward.1} parent=0 // pred_check_branch
    %20 = sbr.rel (0) target = $region21
  $region20: #{neural_net_forward.1} parent=0 // pred_region
    _
  $region21: #{neural_net_forward.1} parent=0 // pred_fallthru
    _
  %v21 = vld [vmem:[%s0] sm:$0x1]
  %v22 = vld [vmem:[%s1] sm:$0xff]
  %v23 = vld [vmem:[%s1 + $0x8] sm:$0xff]
  %v24 = vld [vmem:[%s1 + $0x10] sm:$0xff]
  %v25 = vld [vmem:[%s1 + $0x18] sm:$0xff]
  %v26 = vld [vmem:[%s1 + $0x20] sm:$0xff]
  %v27 = vld [vmem:[%s1 + $0x28] sm:$0xff]
  %v28 = vld [vmem:[%s1 + $0x30] sm:$0xff]
  %v29 = vld [vmem:[%s1 + $0x38] sm:$0xff]
  %v30 = vld [vmem:[%s1 + $0x40] sm:$0xff]
  %v31 = vld [vmem:[%s1 + $0x48] sm:$0xff]
  %v32 = vld [vmem:[%s1 + $0x50] sm:$0xff]
  %v33 = vld [vmem:[%s1 + $0x58] sm:$0xff]
  %v34 = vld [vmem:[%s1 + $0x60] sm:$0xff]
  %v35 = vld [vmem:[%s1 + $0x68] sm:$0xff]
  %v36 = vld [vmem:[%s1 + $0x70] sm:$0xff]
  %v37 = vld [vmem:[%s1 + $0x78] sm:$0xff]
  %v38 = vld [vmem:[%s1 + $0x80] sm:$0xff]
  %v39 = vld [vmem:[%s1 + $0x88] sm:$0xff]
  %v40 = vld [vmem:[%s1 + $0x90] sm:$0xff]
  %v41 = vld [vmem:[%s1 + $0x98] sm:$0xff]
  %v42 = vld [vmem:[%s1 + $0xa0] sm:$0xff]
  %v43 = vld [vmem:[%s1 + $0xa8] sm:$0xff]
  %v44 = vld [vmem:[%s1 + $0xb0] sm:$0xff]
  %v45 = vld [vmem:[%s1 + $0xb8] sm:$0xff]
  %v46 = vld [vmem:[%s1 + $0xc0] sm:$0xff]
  %v47 = vld [vmem:[%s1 + $0xc8] sm:$0xff]
  %v48 = vld [vmem:[%s1 + $0xd0] sm:$0xff]
  %v49 = vld [vmem:[%s1 + $0xd8] sm:$0xff]
  %v50 = vld [vmem:[%s1 + $0xe0] sm:$0xff]
  %v51 = vld [vmem:[%s1 + $0xe8] sm:$0xff]
  %v52 = vld [vmem:[%s1 + $0xf0] sm:$0xff]
  %v53 = vld [vmem:[%s1 + $0xf8] sm:$0xff]
  %v54 = vld [vmem:[%s1 + $0x100] sm:$0xff]
  %v55 = vld [vmem:[%s1 + $0x108] sm:$0xff]
  %v56 = vld [vmem:[%s1 + $0x110] sm:$0xff]
  %v57 = vld [vmem:[%s1 + $0x118] sm:$0xff]
  %v58 = vld [vmem:[%s1 + $0x120] sm:$0xff]
  %v59 = vld [vmem:[%s1 + $0x128] sm:$0xff]
  %v60 = vld [vmem:[%s1 + $0x130] sm:$0xff]
  %v61 = vld [vmem:[%s1 + $0x138] sm:$0xff]
  %v62 = vld [vmem:[%s1 + $0x140] sm:$0xff]
  %v63 = vld [vmem:[%s1 + $0x148] sm:$0xff]
  %v64 = vld [vmem:[%s1 + $0x150] sm:$0xff]
  %v65 = vld [vmem:[%s1 + $0x158] sm:$0xff]
  %v66 = vld [vmem:[%s1 + $0x160] sm:$0xff]
  %v67 = vld [vmem:[%s1 + $0x168] sm:$0xff]
  %v68 = vld [vmem:[%s1 + $0x170] sm:$0xff]
  %v69 = vld [vmem:[%s1 + $0x178] sm:$0xff]
  %v70 = vld [vmem:[%s1 + $0x180] sm:$0xff]
  %v71 = vld [vmem:[%s1 + $0x188] sm:$0xff]
  %v72 = vld [vmem:[%s1 + $0x190] sm:$0xff]
  %v73 = vld [vmem:[%s1 + $0x198] sm:$0xff]
  %v74 = vld [vmem:[%s1 + $0x1a0] sm:$0xff]
  %v75 = vld [vmem:[%s1 + $0x1a8] sm:$0xff]
  %v76 = vld [vmem:[%s1 + $0x1b0] sm:$0xff]
  %v77 = vld [vmem:[%s1 + $0x1b8] sm:$0xff]
  %v78 = vld [vmem:[%s1 + $0x1c0] sm:$0xff]
  %v79 = vld [vmem:[%s1 + $0x1c8] sm:$0xff]
  %v80 = vld [vmem:[%s1 + $0x1d0] sm:$0xff]
  %v81 = vld [vmem:[%s1 + $0x1d8] sm:$0xff]
  %v82 = vld [vmem:[%s1 + $0x1e0] sm:$0xff]
  %v83 = vld [vmem:[%s1 + $0x1e8] sm:$0xff]
  %v84 = vld [vmem:[%s1 + $0x1f0] sm:$0xff]
  %v85 = vld [vmem:[%s1 + $0x1f8] sm:$0xff]
  %v86 = vld [vmem:[%s1 + $0x200] sm:$0xff]
  %v87 = vld [vmem:[%s1 + $0x208] sm:$0xff]
  %v88 = vld [vmem:[%s1 + $0x210] sm:$0xff]
  %v89 = vld [vmem:[%s1 + $0x218] sm:$0xff]
  %v90 = vld [vmem:[%s1 + $0x220] sm:$0xff]
  %v91 = vld [vmem:[%s1 + $0x228] sm:$0xff]
  %v92 = vld [vmem:[%s1 + $0x230] sm:$0xff]
  %v93 = vld [vmem:[%s1 + $0x238] sm:$0xff]
  %v94 = vld [vmem:[%s1 + $0x240] sm:$0xff]
  %v95 = vld [vmem:[%s1 + $0x248] sm:$0xff]
  %v96 = vld [vmem:[%s1 + $0x250] sm:$0xff]
  %v97 = vld [vmem:[%s1 + $0x258] sm:$0xff]
  %v98 = vld [vmem:[%s1 + $0x260] sm:$0xff]
  %v99 = vld [vmem:[%s1 + $0x268] sm:$0xff]
  %v100 = vld [vmem:[%s1 + $0x270] sm:$0xff]
  %v101 = vld [vmem:[%s1 + $0x278] sm:$0xff]
  %v102 = vld [vmem:[%s1 + $0x280] sm:$0xff]
  %v103 = vld [vmem:[%s1 + $0x288] sm:$0xff]
  %v104 = vld [vmem:[%s1 + $0x290] sm:$0xff]
  %v105 = vld [vmem:[%s1 + $0x298] sm:$0xff]
  %v106 = vld [vmem:[%s1 + $0x2a0] sm:$0xff]
  %v107 = vld [vmem:[%s1 + $0x2a8] sm:$0xff]
  %v108 = vld [vmem:[%s1 + $0x2b0] sm:$0xff]
  %v109 = vld [vmem:[%s1 + $0x2b8] sm:$0xff]
  %v110 = vld [vmem:[%s1 + $0x2c0] sm:$0xff]
  %v111 = vld [vmem:[%s1 + $0x2c8] sm:$0xff]
  %v112 = vld [vmem:[%s1 + $0x2d0] sm:$0xff]
  %v113 = vld [vmem:[%s1 + $0x2d8] sm:$0xff]
  %v114 = vld [vmem:[%s1 + $0x2e0] sm:$0xff]
  %v115 = vld [vmem:[%s1 + $0x2e8] sm:$0xff]
  %v116 = vld [vmem:[%s1 + $0x2f0] sm:$0xff]
  %v117 = vld [vmem:[%s1 + $0x2f8] sm:$0xff]
  %v118 = vld [vmem:[%s1 + $0x300] sm:$0xff]
  %v119 = vld [vmem:[%s1 + $0x308] sm:$0xff]
  %v120 = vld [vmem:[%s1 + $0x310] sm:$0xff]
  %v121 = vld [vmem:[%s1 + $0x318] sm:$0xff]
  %v122 = vld [vmem:[%s1 + $0x320] sm:$0xff]
  %v123 = vld [vmem:[%s1 + $0x328] sm:$0xff]
  %v124 = vld [vmem:[%s1 + $0x330] sm:$0xff]
  %v125 = vld [vmem:[%s1 + $0x338] sm:$0xff]
  %v126 = vld [vmem:[%s1 + $0x340] sm:$0xff]
  %v127 = vld [vmem:[%s1 + $0x348] sm:$0xff]
  %v128 = vld [vmem:[%s1 + $0x350] sm:$0xff]
  %v129 = vld [vmem:[%s1 + $0x358] sm:$0xff]
  %v130 = vld [vmem:[%s1 + $0x360] sm:$0xff]
  %v131 = vld [vmem:[%s1 + $0x368] sm:$0xff]
  %v132 = vld [vmem:[%s1 + $0x370] sm:$0xff]
  %v133 = vld [vmem:[%s1 + $0x378] sm:$0xff]
  %v134 = vld [vmem:[%s1 + $0x380] sm:$0xff]
  %v135 = vld [vmem:[%s1 + $0x388] sm:$0xff]
  %v136 = vld [vmem:[%s1 + $0x390] sm:$0xff]
  %v137 = vld [vmem:[%s1 + $0x398] sm:$0xff]
  %v138 = vld [vmem:[%s1 + $0x3a0] sm:$0xff]
  %v139 = vld [vmem:[%s1 + $0x3a8] sm:$0xff]
  %v140 = vld [vmem:[%s1 + $0x3b0] sm:$0xff]
  %v141 = vld [vmem:[%s1 + $0x3b8] sm:$0xff]
  %v142 = vld [vmem:[%s1 + $0x3c0] sm:$0xff]
  %v143 = vld [vmem:[%s1 + $0x3c8] sm:$0xff]
  %v144 = vld [vmem:[%s1 + $0x3d0] sm:$0xff]
  %v145 = vld [vmem:[%s1 + $0x3d8] sm:$0xff]
  %v146 = vld [vmem:[%s1 + $0x3e0] sm:$0xff]
  %v147 = vld [vmem:[%s1 + $0x3e8] sm:$0xff]
  %v148 = vld [vmem:[%s1 + $0x3f0] sm:$0xff]
  %v149 = vld [vmem:[%s1 + $0x3f8] sm:$0xff]
  %v150 = vld [vmem:[%s2] sm:$0xff]
  %v152 = vlaneseq
  %v153 = vshrl.u32 %v152, 7
  %v154 = vsub.s32 0, %v153
  %v155 = vrot.slane %v150, %v154
  %v156 = vlaneseq
  %v157 = vshrl.u32 %v156, 7
  %v158 = vsub.s32 1, %v157
  %v159 = vrot.slane %v150, %v158
  %v160 = vlaneseq
  %v161 = vshrl.u32 %v160, 7
  %v162 = vsub.s32 2, %v161
  %v163 = vrot.slane %v150, %v162
  %v164 = vlaneseq
  %v165 = vshrl.u32 %v164, 7
  %v166 = vsub.s32 3, %v165
  %v167 = vrot.slane %v150, %v166
  %v168 = vlaneseq
  %v169 = vshrl.u32 %v168, 7
  %v170 = vsub.s32 4, %v169
  %v171 = vrot.slane %v150, %v170
  %v172 = vlaneseq
  %v173 = vshrl.u32 %v172, 7
  %v174 = vsub.s32 5, %v173
  %v175 = vrot.slane %v150, %v174
  %v176 = vlaneseq
  %v177 = vshrl.u32 %v176, 7
  %v178 = vsub.s32 6, %v177
  %v179 = vrot.slane %v150, %v178
  %v180 = vlaneseq
  %v181 = vshrl.u32 %v180, 7
  %v182 = vsub.s32 7, %v181
  %v183 = vrot.slane %v150, %v182
  %192 = vmatprep.subr.mxu0 %v23
  %193 = vmatpush1.msra.mxu0 %v22
  %194 = vmatprep.subr.mxu0 %v31
  %195 = vmatpush1.msra.mxu0 %v30
  %196 = vmatprep.subr.mxu0 %v39
  %197 = vmatpush1.msra.mxu0 %v38
  %198 = vmatprep.subr.mxu0 %v47
  %199 = vmatpush1.msra.mxu0 %v46
  %200 = vmatprep.subr.mxu0 %v55
  %201 = vmatpush1.msra.mxu0 %v54
  %202 = vmatprep.subr.mxu0 %v63
  %203 = vmatpush1.msra.mxu0 %v62
  %204 = vmatprep.subr.mxu0 %v71
  %205 = vmatpush1.msra.mxu0 %v70
  %206 = vmatprep.subr.mxu0 %v79
  %207 = vmatpush1.msra.mxu0 %v78
  %208 = vmatprep.subr.mxu0 %v87
  %209 = vmatpush1.msra.mxu0 %v86
  %210 = vmatprep.subr.mxu0 %v95
  %211 = vmatpush1.msra.mxu0 %v94
  %212 = vmatprep.subr.mxu0 %v103
  %213 = vmatpush1.msra.mxu0 %v102
  %214 = vmatprep.subr.mxu0 %v111
  %215 = vmatpush1.msra.mxu0 %v110
  %216 = vmatprep.subr.mxu0 %v119
  %217 = vmatpush1.msra.mxu0 %v118
  %218 = vmatprep.subr.mxu0 %v127
  %219 = vmatpush1.msra.mxu0 %v126
  %220 = vmatprep.subr.mxu0 %v135
  %221 = vmatpush1.msra.mxu0 %v134
  %222 = vmatprep.subr.mxu0 %v143
  %223 = vmatpush1.msra.mxu0 %v142
  %224 = vmatprep.subr.mxu0 0.0
  %225 = vmatpush1.msra.mxu0 0.0
  %226 = vmatprep.subr.mxu0 0.0
  %227 = vmatpush1.msra.mxu0 0.0
  %228 = vmatprep.subr.mxu0 0.0
  %229 = vmatpush1.msra.mxu0 0.0
  %230 = vmatprep.subr.mxu0 0.0
  %231 = vmatpush1.msra.mxu0 0.0
  %232 = vmatprep.subr.mxu0 0.0
  %233 = vmatpush1.msra.mxu0 0.0
  %234 = vmatprep.subr.mxu0 0.0
  %235 = vmatpush1.msra.mxu0 0.0
  %236 = vmatprep.subr.mxu0 0.0
  %237 = vmatpush1.msra.mxu0 0.0
  %238 = vmatprep.subr.mxu0 0.0
  %239 = vmatpush1.msra.mxu0 0.0
  %240 = vmatprep.subr.mxu0 0.0
  %241 = vmatpush1.msra.mxu0 0.0
  %242 = vmatprep.subr.mxu0 0.0
  %243 = vmatpush1.msra.mxu0 0.0
  %244 = vmatprep.subr.mxu0 0.0
  %245 = vmatpush1.msra.mxu0 0.0
  %246 = vmatprep.subr.mxu0 0.0
  %247 = vmatpush1.msra.mxu0 0.0
  %248 = vmatprep.subr.mxu0 0.0
  %249 = vmatpush1.msra.mxu0 0.0
  %250 = vmatprep.subr.mxu0 0.0
  %251 = vmatpush1.msra.mxu0 0.0
  %252 = vmatprep.subr.mxu0 0.0
  %253 = vmatpush1.msra.mxu0 0.0
  %254 = vmatprep.subr.mxu0 0.0
  %255 = vmatpush1.msra.mxu0 0.0
  %256 = vmatprep.mubr.f32.mxu0 0.0
  %257 = vmatmul.mubr.f32.gmra.mrb[0].mxu0 %v21
  %v258 = vpop.f32.mrb[0].mxu0
  %v259 = vadd.f32 %v155, %v258
  %v260 = vpop.f32.mrb[0].mxu0
  %v261 = vadd.f32 %v159, %v260
  %262 = vdwg.mxu0
  %263 = vmatprep.subr.mxu0 %v25
  %264 = vmatpush1.msra.mxu0 %v24
  %265 = vmatprep.subr.mxu0 %v33
  %266 = vmatpush1.msra.mxu0 %v32
  %267 = vmatprep.subr.mxu0 %v41
  %268 = vmatpush1.msra.mxu0 %v40
  %269 = vmatprep.subr.mxu0 %v49
  %270 = vmatpush1.msra.mxu0 %v48
  %271 = vmatprep.subr.mxu0 %v57
  %272 = vmatpush1.msra.mxu0 %v56
  %273 = vmatprep.subr.mxu0 %v65
  %274 = vmatpush1.msra.mxu0 %v64
  %275 = vmatprep.subr.mxu0 %v73
  %276 = vmatpush1.msra.mxu0 %v72
  %277 = vmatprep.subr.mxu0 %v81
  %278 = vmatpush1.msra.mxu0 %v80
  %279 = vmatprep.subr.mxu0 %v89
  %280 = vmatpush1.msra.mxu0 %v88
  %281 = vmatprep.subr.mxu0 %v97
  %282 = vmatpush1.msra.mxu0 %v96
  %283 = vmatprep.subr.mxu0 %v105
  %284 = vmatpush1.msra.mxu0 %v104
  %285 = vmatprep.subr.mxu0 %v113
  %286 = vmatpush1.msra.mxu0 %v112
  %287 = vmatprep.subr.mxu0 %v121
  %288 = vmatpush1.msra.mxu0 %v120
  %289 = vmatprep.subr.mxu0 %v129
  %290 = vmatpush1.msra.mxu0 %v128
  %291 = vmatprep.subr.mxu0 %v137
  %292 = vmatpush1.msra.mxu0 %v136
  %293 = vmatprep.subr.mxu0 %v145
  %294 = vmatpush1.msra.mxu0 %v144
  %295 = vmatprep.subr.mxu0 0.0
  %296 = vmatpush1.msra.mxu0 0.0
  %297 = vmatprep.subr.mxu0 0.0
  %298 = vmatpush1.msra.mxu0 0.0
  %299 = vmatprep.subr.mxu0 0.0
  %300 = vmatpush1.msra.mxu0 0.0
  %301 = vmatprep.subr.mxu0 0.0
  %302 = vmatpush1.msra.mxu0 0.0
  %303 = vmatprep.subr.mxu0 0.0
  %304 = vmatpush1.msra.mxu0 0.0
  %305 = vmatprep.subr.mxu0 0.0
  %306 = vmatpush1.msra.mxu0 0.0
  %307 = vmatprep.subr.mxu0 0.0
  %308 = vmatpush1.msra.mxu0 0.0
  %309 = vmatprep.subr.mxu0 0.0
  %310 = vmatpush1.msra.mxu0 0.0
  %311 = vmatprep.subr.mxu0 0.0
  %312 = vmatpush1.msra.mxu0 0.0
  %313 = vmatprep.subr.mxu0 0.0
  %314 = vmatpush1.msra.mxu0 0.0
  %315 = vmatprep.subr.mxu0 0.0
  %316 = vmatpush1.msra.mxu0 0.0
  %317 = vmatprep.subr.mxu0 0.0
  %318 = vmatpush1.msra.mxu0 0.0
  %319 = vmatprep.subr.mxu0 0.0
  %320 = vmatpush1.msra.mxu0 0.0
  %321 = vmatprep.subr.mxu0 0.0
  %322 = vmatpush1.msra.mxu0 0.0
  %323 = vmatprep.subr.mxu0 0.0
  %324 = vmatpush1.msra.mxu0 0.0
  %325 = vmatprep.subr.mxu0 0.0
  %326 = vmatpush1.msra.mxu0 0.0
  %327 = vmatprep.mubr.f32.mxu0 0.0
  %328 = vmatmul.mubr.f32.gmra.mrb[0].mxu0 %v21
  %v329 = vpop.f32.mrb[0].mxu0
  %v330 = vadd.f32 %v163, %v329
  %v331 = vpop.f32.mrb[0].mxu0
  %v332 = vadd.f32 %v167, %v331
  %333 = vdwg.mxu0
  %334 = vmatprep.subr.mxu0 %v27
  %335 = vmatpush1.msra.mxu0 %v26
  %336 = vmatprep.subr.mxu0 %v35
  %337 = vmatpush1.msra.mxu0 %v34
  %338 = vmatprep.subr.mxu0 %v43
  %339 = vmatpush1.msra.mxu0 %v42
  %340 = vmatprep.subr.mxu0 %v51
  %341 = vmatpush1.msra.mxu0 %v50
  %342 = vmatprep.subr.mxu0 %v59
  %343 = vmatpush1.msra.mxu0 %v58
  %344 = vmatprep.subr.mxu0 %v67
  %345 = vmatpush1.msra.mxu0 %v66
  %346 = vmatprep.subr.mxu0 %v75
  %347 = vmatpush1.msra.mxu0 %v74
  %348 = vmatprep.subr.mxu0 %v83
  %349 = vmatpush1.msra.mxu0 %v82
  %350 = vmatprep.subr.mxu0 %v91
  %351 = vmatpush1.msra.mxu0 %v90
  %352 = vmatprep.subr.mxu0 %v99
  %353 = vmatpush1.msra.mxu0 %v98
  %354 = vmatprep.subr.mxu0 %v107
  %355 = vmatpush1.msra.mxu0 %v106
  %356 = vmatprep.subr.mxu0 %v115
  %357 = vmatpush1.msra.mxu0 %v114
  %358 = vmatprep.subr.mxu0 %v123
  %359 = vmatpush1.msra.mxu0 %v122
  %360 = vmatprep.subr.mxu0 %v131
  %361 = vmatpush1.msra.mxu0 %v130
  %362 = vmatprep.subr.mxu0 %v139
  %363 = vmatpush1.msra.mxu0 %v138
  %364 = vmatprep.subr.mxu0 %v147
  %365 = vmatpush1.msra.mxu0 %v146
  %366 = vmatprep.subr.mxu0 0.0
  %367 = vmatpush1.msra.mxu0 0.0
  %368 = vmatprep.subr.mxu0 0.0
  %369 = vmatpush1.msra.mxu0 0.0
  %370 = vmatprep.subr.mxu0 0.0
  %371 = vmatpush1.msra.mxu0 0.0
  %372 = vmatprep.subr.mxu0 0.0
  %373 = vmatpush1.msra.mxu0 0.0
  %374 = vmatprep.subr.mxu0 0.0
  %375 = vmatpush1.msra.mxu0 0.0
  %376 = vmatprep.subr.mxu0 0.0
  %377 = vmatpush1.msra.mxu0 0.0
  %378 = vmatprep.subr.mxu0 0.0
  %379 = vmatpush1.msra.mxu0 0.0
  %380 = vmatprep.subr.mxu0 0.0
  %381 = vmatpush1.msra.mxu0 0.0
  %382 = vmatprep.subr.mxu0 0.0
  %383 = vmatpush1.msra.mxu0 0.0
  %384 = vmatprep.subr.mxu0 0.0
  %385 = vmatpush1.msra.mxu0 0.0
  %386 = vmatprep.subr.mxu0 0.0
  %387 = vmatpush1.msra.mxu0 0.0
  %388 = vmatprep.subr.mxu0 0.0
  %389 = vmatpush1.msra.mxu0 0.0
  %390 = vmatprep.subr.mxu0 0.0
  %391 = vmatpush1.msra.mxu0 0.0
  %392 = vmatprep.subr.mxu0 0.0
  %393 = vmatpush1.msra.mxu0 0.0
  %394 = vmatprep.subr.mxu0 0.0
  %395 = vmatpush1.msra.mxu0 0.0
  %396 = vmatprep.subr.mxu0 0.0
  %397 = vmatpush1.msra.mxu0 0.0
  %398 = vmatprep.mubr.f32.mxu0 0.0
  %399 = vmatmul.mubr.f32.gmra.mrb[0].mxu0 %v21
  %v400 = vpop.f32.mrb[0].mxu0
  %v401 = vadd.f32 %v171, %v400
  %v402 = vpop.f32.mrb[0].mxu0
  %v403 = vadd.f32 %v175, %v402
  %404 = vdwg.mxu0
  %405 = vmatprep.subr.mxu0 %v29
  %406 = vmatpush1.msra.mxu0 %v28
  %407 = vmatprep.subr.mxu0 %v37
  %408 = vmatpush1.msra.mxu0 %v36
  %409 = vmatprep.subr.mxu0 %v45
  %410 = vmatpush1.msra.mxu0 %v44
  %411 = vmatprep.subr.mxu0 %v53
  %412 = vmatpush1.msra.mxu0 %v52
  %413 = vmatprep.subr.mxu0 %v61
  %414 = vmatpush1.msra.mxu0 %v60
  %415 = vmatprep.subr.mxu0 %v69
  %416 = vmatpush1.msra.mxu0 %v68
  %417 = vmatprep.subr.mxu0 %v77
  %418 = vmatpush1.msra.mxu0 %v76
  %419 = vmatprep.subr.mxu0 %v85
  %420 = vmatpush1.msra.mxu0 %v84
  %421 = vmatprep.subr.mxu0 %v93
  %422 = vmatpush1.msra.mxu0 %v92
  %423 = vmatprep.subr.mxu0 %v101
  %424 = vmatpush1.msra.mxu0 %v100
  %425 = vmatprep.subr.mxu0 %v109
  %426 = vmatpush1.msra.mxu0 %v108
  %427 = vmatprep.subr.mxu0 %v117
  %428 = vmatpush1.msra.mxu0 %v116
  %429 = vmatprep.subr.mxu0 %v125
  %430 = vmatpush1.msra.mxu0 %v124
  %431 = vmatprep.subr.mxu0 %v133
  %432 = vmatpush1.msra.mxu0 %v132
  %433 = vmatprep.subr.mxu0 %v141
  %434 = vmatpush1.msra.mxu0 %v140
  %435 = vmatprep.subr.mxu0 %v149
  %436 = vmatpush1.msra.mxu0 %v148
  %437 = vmatprep.subr.mxu0 0.0
  %438 = vmatpush1.msra.mxu0 0.0
  %439 = vmatprep.subr.mxu0 0.0
  %440 = vmatpush1.msra.mxu0 0.0
  %441 = vmatprep.subr.mxu0 0.0
  %442 = vmatpush1.msra.mxu0 0.0
  %443 = vmatprep.subr.mxu0 0.0
  %444 = vmatpush1.msra.mxu0 0.0
  %445 = vmatprep.subr.mxu0 0.0
  %446 = vmatpush1.msra.mxu0 0.0
  %447 = vmatprep.subr.mxu0 0.0
  %448 = vmatpush1.msra.mxu0 0.0
  %449 = vmatprep.subr.mxu0 0.0
  %450 = vmatpush1.msra.mxu0 0.0
  %451 = vmatprep.subr.mxu0 0.0
  %452 = vmatpush1.msra.mxu0 0.0
  %453 = vmatprep.subr.mxu0 0.0
  %454 = vmatpush1.msra.mxu0 0.0
  %455 = vmatprep.subr.mxu0 0.0
  %456 = vmatpush1.msra.mxu0 0.0
  %457 = vmatprep.subr.mxu0 0.0
  %458 = vmatpush1.msra.mxu0 0.0
  %459 = vmatprep.subr.mxu0 0.0
  %460 = vmatpush1.msra.mxu0 0.0
  %461 = vmatprep.subr.mxu0 0.0
  %462 = vmatpush1.msra.mxu0 0.0
  %463 = vmatprep.subr.mxu0 0.0
  %464 = vmatpush1.msra.mxu0 0.0
  %465 = vmatprep.subr.mxu0 0.0
  %466 = vmatpush1.msra.mxu0 0.0
  %467 = vmatprep.subr.mxu0 0.0
  %468 = vmatpush1.msra.mxu0 0.0
  %469 = vmatprep.mubr.f32.mxu0 0.0
  %470 = vmatmul.mubr.f32.gmra.mrb[0].mxu0 %v21
  %v471 = vpop.f32.mrb[0].mxu0
  %v472 = vadd.f32 %v179, %v471
  %v473 = vpop.f32.mrb[0].mxu0
  %v474 = vadd.f32 %v183, %v473
  %475 = vdwg.mxu0
  %v476 = vmax.f32 %v259, 0.0
  %v477 = vmax.f32 %v261, 0.0
  %v478 = vmax.f32 %v330, 0.0
  %v479 = vmax.f32 %v332, 0.0
  %v480 = vmax.f32 %v401, 0.0
  %v481 = vmax.f32 %v403, 0.0
  %v482 = vmax.f32 %v472, 0.0
  %v483 = vmax.f32 %v474, 0.0
  %v484 = vld [vmem:[%s3] sm:$0xff]
  %v485 = vld [vmem:[%s3 + $0x8] sm:$0xff]
  %v486 = vld [vmem:[%s3 + $0x10] sm:$0xff]
  %v487 = vld [vmem:[%s3 + $0x18] sm:$0xff]
  %v488 = vld [vmem:[%s3 + $0x20] sm:$0xff]
  %v489 = vld [vmem:[%s3 + $0x28] sm:$0xff]
  %v490 = vld [vmem:[%s3 + $0x30] sm:$0xff]
  %v491 = vld [vmem:[%s3 + $0x38] sm:$0xff]
  %v492 = vld [vmem:[%s3 + $0x40] sm:$0xff]
  %v493 = vld [vmem:[%s3 + $0x48] sm:$0xff]
  %v494 = vld [vmem:[%s3 + $0x50] sm:$0xff]
  %v495 = vld [vmem:[%s3 + $0x58] sm:$0xff]
  %v496 = vld [vmem:[%s3 + $0x60] sm:$0xff]
  %v497 = vld [vmem:[%s3 + $0x68] sm:$0xff]
  %v498 = vld [vmem:[%s3 + $0x70] sm:$0xff]
  %v499 = vld [vmem:[%s3 + $0x78] sm:$0xff]
  %v500 = vld [vmem:[%s3 + $0x80] sm:$0xff]
  %v501 = vld [vmem:[%s3 + $0x88] sm:$0xff]
  %v502 = vld [vmem:[%s3 + $0x90] sm:$0xff]
  %v503 = vld [vmem:[%s3 + $0x98] sm:$0xff]
  %v504 = vld [vmem:[%s3 + $0xa0] sm:$0xff]
  %v505 = vld [vmem:[%s3 + $0xa8] sm:$0xff]
  %v506 = vld [vmem:[%s3 + $0xb0] sm:$0xff]
  %v507 = vld [vmem:[%s3 + $0xb8] sm:$0xff]
  %v508 = vld [vmem:[%s3 + $0xc0] sm:$0xff]
  %v509 = vld [vmem:[%s3 + $0xc8] sm:$0xff]
  %v510 = vld [vmem:[%s3 + $0xd0] sm:$0xff]
  %v511 = vld [vmem:[%s3 + $0xd8] sm:$0xff]
  %v512 = vld [vmem:[%s3 + $0xe0] sm:$0xff]
  %v513 = vld [vmem:[%s3 + $0xe8] sm:$0xff]
  %v514 = vld [vmem:[%s3 + $0xf0] sm:$0xff]
  %v515 = vld [vmem:[%s3 + $0xf8] sm:$0xff]
  %v516 = vld [vmem:[%s3 + $0x100] sm:$0xff]
  %v517 = vld [vmem:[%s3 + $0x108] sm:$0xff]
  %v518 = vld [vmem:[%s3 + $0x110] sm:$0xff]
  %v519 = vld [vmem:[%s3 + $0x118] sm:$0xff]
  %v520 = vld [vmem:[%s3 + $0x120] sm:$0xff]
  %v521 = vld [vmem:[%s3 + $0x128] sm:$0xff]
  %v522 = vld [vmem:[%s3 + $0x130] sm:$0xff]
  %v523 = vld [vmem:[%s3 + $0x138] sm:$0xff]
  %v524 = vld [vmem:[%s3 + $0x140] sm:$0xff]
  %v525 = vld [vmem:[%s3 + $0x148] sm:$0xff]
  %v526 = vld [vmem:[%s3 + $0x150] sm:$0xff]
  %v527 = vld [vmem:[%s3 + $0x158] sm:$0xff]
  %v528 = vld [vmem:[%s3 + $0x160] sm:$0xff]
  %v529 = vld [vmem:[%s3 + $0x168] sm:$0xff]
  %v530 = vld [vmem:[%s3 + $0x170] sm:$0xff]
  %v531 = vld [vmem:[%s3 + $0x178] sm:$0xff]
  %v532 = vld [vmem:[%s3 + $0x180] sm:$0xff]
  %v533 = vld [vmem:[%s3 + $0x188] sm:$0xff]
  %v534 = vld [vmem:[%s3 + $0x190] sm:$0xff]
  %v535 = vld [vmem:[%s3 + $0x198] sm:$0xff]
  %v536 = vld [vmem:[%s3 + $0x1a0] sm:$0xff]
  %v537 = vld [vmem:[%s3 + $0x1a8] sm:$0xff]
  %v538 = vld [vmem:[%s3 + $0x1b0] sm:$0xff]
  %v539 = vld [vmem:[%s3 + $0x1b8] sm:$0xff]
  %v540 = vld [vmem:[%s3 + $0x1c0] sm:$0xff]
  %v541 = vld [vmem:[%s3 + $0x1c8] sm:$0xff]
  %v542 = vld [vmem:[%s3 + $0x1d0] sm:$0xff]
  %v543 = vld [vmem:[%s3 + $0x1d8] sm:$0xff]
  %v544 = vld [vmem:[%s3 + $0x1e0] sm:$0xff]
  %v545 = vld [vmem:[%s3 + $0x1e8] sm:$0xff]
  %v546 = vld [vmem:[%s3 + $0x1f0] sm:$0xff]
  %v547 = vld [vmem:[%s3 + $0x1f8] sm:$0xff]
  %v548 = vld [vmem:[%s3 + $0x200] sm:$0xff]
  %v549 = vld [vmem:[%s3 + $0x208] sm:$0xff]
  %v550 = vld [vmem:[%s3 + $0x210] sm:$0xff]
  %v551 = vld [vmem:[%s3 + $0x218] sm:$0xff]
  %v552 = vld [vmem:[%s3 + $0x220] sm:$0xff]
  %v553 = vld [vmem:[%s3 + $0x228] sm:$0xff]
  %v554 = vld [vmem:[%s3 + $0x230] sm:$0xff]
  %v555 = vld [vmem:[%s3 + $0x238] sm:$0xff]
  %v556 = vld [vmem:[%s3 + $0x240] sm:$0xff]
  %v557 = vld [vmem:[%s3 + $0x248] sm:$0xff]
  %v558 = vld [vmem:[%s3 + $0x250] sm:$0xff]
  %v559 = vld [vmem:[%s3 + $0x258] sm:$0xff]
  %v560 = vld [vmem:[%s3 + $0x260] sm:$0xff]
  %v561 = vld [vmem:[%s3 + $0x268] sm:$0xff]
  %v562 = vld [vmem:[%s3 + $0x270] sm:$0xff]
  %v563 = vld [vmem:[%s3 + $0x278] sm:$0xff]
  %v564 = vld [vmem:[%s3 + $0x280] sm:$0xff]
  %v565 = vld [vmem:[%s3 + $0x288] sm:$0xff]
  %v566 = vld [vmem:[%s3 + $0x290] sm:$0xff]
  %v567 = vld [vmem:[%s3 + $0x298] sm:$0xff]
  %v568 = vld [vmem:[%s3 + $0x2a0] sm:$0xff]
  %v569 = vld [vmem:[%s3 + $0x2a8] sm:$0xff]
  %v570 = vld [vmem:[%s3 + $0x2b0] sm:$0xff]
  %v571 = vld [vmem:[%s3 + $0x2b8] sm:$0xff]
  %v572 = vld [vmem:[%s3 + $0x2c0] sm:$0xff]
  %v573 = vld [vmem:[%s3 + $0x2c8] sm:$0xff]
  %v574 = vld [vmem:[%s3 + $0x2d0] sm:$0xff]
  %v575 = vld [vmem:[%s3 + $0x2d8] sm:$0xff]
  %v576 = vld [vmem:[%s3 + $0x2e0] sm:$0xff]
  %v577 = vld [vmem:[%s3 + $0x2e8] sm:$0xff]
  %v578 = vld [vmem:[%s3 + $0x2f0] sm:$0xff]
  %v579 = vld [vmem:[%s3 + $0x2f8] sm:$0xff]
  %v580 = vld [vmem:[%s3 + $0x300] sm:$0xff]
  %v581 = vld [vmem:[%s3 + $0x308] sm:$0xff]
  %v582 = vld [vmem:[%s3 + $0x310] sm:$0xff]
  %v583 = vld [vmem:[%s3 + $0x318] sm:$0xff]
  %v584 = vld [vmem:[%s3 + $0x320] sm:$0xff]
  %v585 = vld [vmem:[%s3 + $0x328] sm:$0xff]
  %v586 = vld [vmem:[%s3 + $0x330] sm:$0xff]
  %v587 = vld [vmem:[%s3 + $0x338] sm:$0xff]
  %v588 = vld [vmem:[%s3 + $0x340] sm:$0xff]
  %v589 = vld [vmem:[%s3 + $0x348] sm:$0xff]
  %v590 = vld [vmem:[%s3 + $0x350] sm:$0xff]
  %v591 = vld [vmem:[%s3 + $0x358] sm:$0xff]
  %v592 = vld [vmem:[%s3 + $0x360] sm:$0xff]
  %v593 = vld [vmem:[%s3 + $0x368] sm:$0xff]
  %v594 = vld [vmem:[%s3 + $0x370] sm:$0xff]
  %v595 = vld [vmem:[%s3 + $0x378] sm:$0xff]
  %v596 = vld [vmem:[%s3 + $0x380] sm:$0xff]
  %v597 = vld [vmem:[%s3 + $0x388] sm:$0xff]
  %v598 = vld [vmem:[%s3 + $0x390] sm:$0xff]
  %v599 = vld [vmem:[%s3 + $0x398] sm:$0xff]
  %v600 = vld [vmem:[%s3 + $0x3a0] sm:$0xff]
  %v601 = vld [vmem:[%s3 + $0x3a8] sm:$0xff]
  %v602 = vld [vmem:[%s3 + $0x3b0] sm:$0xff]
  %v603 = vld [vmem:[%s3 + $0x3b8] sm:$0xff]
  %v604 = vld [vmem:[%s3 + $0x3c0] sm:$0xff]
  %v605 = vld [vmem:[%s3 + $0x3c8] sm:$0xff]
  %v606 = vld [vmem:[%s3 + $0x3d0] sm:$0xff]
  %v607 = vld [vmem:[%s3 + $0x3d8] sm:$0xff]
  %v608 = vld [vmem:[%s3 + $0x3e0] sm:$0xff]
  %v609 = vld [vmem:[%s3 + $0x3e8] sm:$0xff]
  %v610 = vld [vmem:[%s3 + $0x3f0] sm:$0xff]
  %v611 = vld [vmem:[%s3 + $0x3f8] sm:$0xff]
  %s612 = sld [smem:[#allocation2]]
  %v613 = vstv %s612
  %614 = vmatprep.subr.mxu0 0.0
  %615 = vmatpush1.msra.mxu0 %v484
  %616 = vmatprep.subr.mxu0 0.0
  %617 = vmatpush1.msra.mxu0 %v485
  %618 = vmatprep.subr.mxu0 0.0
  %619 = vmatpush1.msra.mxu0 %v486
  %620 = vmatprep.subr.mxu0 0.0
  %621 = vmatpush1.msra.mxu0 %v487
  %622 = vmatprep.subr.mxu0 0.0
  %623 = vmatpush1.msra.mxu0 %v488
  %624 = vmatprep.subr.mxu0 0.0
  %625 = vmatpush1.msra.mxu0 %v489
  %626 = vmatprep.subr.mxu0 0.0
  %627 = vmatpush1.msra.mxu0 %v490
  %628 = vmatprep.subr.mxu0 0.0
  %629 = vmatpush1.msra.mxu0 %v491
  %630 = vmatprep.subr.mxu0 0.0
  %631 = vmatpush1.msra.mxu0 %v492
  %632 = vmatprep.subr.mxu0 0.0
  %633 = vmatpush1.msra.mxu0 %v493
  %634 = vmatprep.subr.mxu0 0.0
  %635 = vmatpush1.msra.mxu0 %v494
  %636 = vmatprep.subr.mxu0 0.0
  %637 = vmatpush1.msra.mxu0 %v495
  %638 = vmatprep.subr.mxu0 0.0
  %639 = vmatpush1.msra.mxu0 %v496
  %640 = vmatprep.subr.mxu0 0.0
  %641 = vmatpush1.msra.mxu0 %v497
  %642 = vmatprep.subr.mxu0 0.0
  %643 = vmatpush1.msra.mxu0 %v498
  %644 = vmatprep.subr.mxu0 0.0
  %645 = vmatpush1.msra.mxu0 %v499
  %646 = vmatprep.subr.mxu0 0.0
  %647 = vmatpush1.msra.mxu0 %v500
  %648 = vmatprep.subr.mxu0 0.0
  %649 = vmatpush1.msra.mxu0 %v501
  %650 = vmatprep.subr.mxu0 0.0
  %651 = vmatpush1.msra.mxu0 %v502
  %652 = vmatprep.subr.mxu0 0.0
  %653 = vmatpush1.msra.mxu0 %v503
  %654 = vmatprep.subr.mxu0 0.0
  %655 = vmatpush1.msra.mxu0 %v504
  %656 = vmatprep.subr.mxu0 0.0
  %657 = vmatpush1.msra.mxu0 %v505
  %658 = vmatprep.subr.mxu0 0.0
  %659 = vmatpush1.msra.mxu0 %v506
  %660 = vmatprep.subr.mxu0 0.0
  %661 = vmatpush1.msra.mxu0 %v507
  %662 = vmatprep.subr.mxu0 0.0
  %663 = vmatpush1.msra.mxu0 %v508
  %664 = vmatprep.subr.mxu0 0.0
  %665 = vmatpush1.msra.mxu0 %v509
  %666 = vmatprep.subr.mxu0 0.0
  %667 = vmatpush1.msra.mxu0 %v510
  %668 = vmatprep.subr.mxu0 0.0
  %669 = vmatpush1.msra.mxu0 %v511
  %670 = vmatprep.subr.mxu0 0.0
  %671 = vmatpush1.msra.mxu0 %v512
  %672 = vmatprep.subr.mxu0 0.0
  %673 = vmatpush1.msra.mxu0 %v513
  %674 = vmatprep.subr.mxu0 0.0
  %675 = vmatpush1.msra.mxu0 %v514
  %676 = vmatprep.subr.mxu0 0.0
  %677 = vmatpush1.msra.mxu0 %v515
  %678 = vmatprep.mubr.f32.mxu0 %v477
  %679 = vmatmul.mubr.f32.gmra.mrb[0].mxu0 %v476
  %v680 = vpop.f32.mrb[0].mxu0
  %v681 = vadd.f32 %v613, %v680
  %v682 = vpop.f32.mrb[0].mxu0
  %683 = vdwg.mxu0
  %684 = vmatprep.subr.mxu0 0.0
  %685 = vmatpush1.msra.mxu0 %v516
  %686 = vmatprep.subr.mxu0 0.0
  %687 = vmatpush1.msra.mxu0 %v517
  %688 = vmatprep.subr.mxu0 0.0
  %689 = vmatpush1.msra.mxu0 %v518
  %690 = vmatprep.subr.mxu0 0.0
  %691 = vmatpush1.msra.mxu0 %v519
  %692 = vmatprep.subr.mxu0 0.0
  %693 = vmatpush1.msra.mxu0 %v520
  %694 = vmatprep.subr.mxu0 0.0
  %695 = vmatpush1.msra.mxu0 %v521
  %696 = vmatprep.subr.mxu0 0.0
  %697 = vmatpush1.msra.mxu0 %v522
  %698 = vmatprep.subr.mxu0 0.0
  %699 = vmatpush1.msra.mxu0 %v523
  %700 = vmatprep.subr.mxu0 0.0
  %701 = vmatpush1.msra.mxu0 %v524
  %702 = vmatprep.subr.mxu0 0.0
  %703 = vmatpush1.msra.mxu0 %v525
  %704 = vmatprep.subr.mxu0 0.0
  %705 = vmatpush1.msra.mxu0 %v526
  %706 = vmatprep.subr.mxu0 0.0
  %707 = vmatpush1.msra.mxu0 %v527
  %708 = vmatprep.subr.mxu0 0.0
  %709 = vmatpush1.msra.mxu0 %v528
  %710 = vmatprep.subr.mxu0 0.0
  %711 = vmatpush1.msra.mxu0 %v529
  %712 = vmatprep.subr.mxu0 0.0
  %713 = vmatpush1.msra.mxu0 %v530
  %714 = vmatprep.subr.mxu0 0.0
  %715 = vmatpush1.msra.mxu0 %v531
  %716 = vmatprep.subr.mxu0 0.0
  %717 = vmatpush1.msra.mxu0 %v532
  %718 = vmatprep.subr.mxu0 0.0
  %719 = vmatpush1.msra.mxu0 %v533
  %720 = vmatprep.subr.mxu0 0.0
  %721 = vmatpush1.msra.mxu0 %v534
  %722 = vmatprep.subr.mxu0 0.0
  %723 = vmatpush1.msra.mxu0 %v535
  %724 = vmatprep.subr.mxu0 0.0
  %725 = vmatpush1.msra.mxu0 %v536
  %726 = vmatprep.subr.mxu0 0.0
  %727 = vmatpush1.msra.mxu0 %v537
  %728 = vmatprep.subr.mxu0 0.0
  %729 = vmatpush1.msra.mxu0 %v538
  %730 = vmatprep.subr.mxu0 0.0
  %731 = vmatpush1.msra.mxu0 %v539
  %732 = vmatprep.subr.mxu0 0.0
  %733 = vmatpush1.msra.mxu0 %v540
  %734 = vmatprep.subr.mxu0 0.0
  %735 = vmatpush1.msra.mxu0 %v541
  %736 = vmatprep.subr.mxu0 0.0
  %737 = vmatpush1.msra.mxu0 %v542
  %738 = vmatprep.subr.mxu0 0.0
  %739 = vmatpush1.msra.mxu0 %v543
  %740 = vmatprep.subr.mxu0 0.0
  %741 = vmatpush1.msra.mxu0 %v544
  %742 = vmatprep.subr.mxu0 0.0
  %743 = vmatpush1.msra.mxu0 %v545
  %744 = vmatprep.subr.mxu0 0.0
  %745 = vmatpush1.msra.mxu0 %v546
  %746 = vmatprep.subr.mxu0 0.0
  %747 = vmatpush1.msra.mxu0 %v547
  %748 = vmatprep.mubr.f32.mxu0 %v479
  %749 = vmatmul.mubr.f32.gmra.mrb[0].mxu0 %v478
  %v750 = vpop.f32.mrb[0].mxu0
  %v751 = vadd.f32 %v681, %v750
  %v752 = vpop.f32.mrb[0].mxu0
  %753 = vdwg.mxu0
  %754 = vmatprep.subr.mxu0 0.0
  %755 = vmatpush1.msra.mxu0 %v548
  %756 = vmatprep.subr.mxu0 0.0
  %757 = vmatpush1.msra.mxu0 %v549
  %758 = vmatprep.subr.mxu0 0.0
  %759 = vmatpush1.msra.mxu0 %v550
  %760 = vmatprep.subr.mxu0 0.0
  %761 = vmatpush1.msra.mxu0 %v551
  %762 = vmatprep.subr.mxu0 0.0
  %763 = vmatpush1.msra.mxu0 %v552
  %764 = vmatprep.subr.mxu0 0.0
  %765 = vmatpush1.msra.mxu0 %v553
  %766 = vmatprep.subr.mxu0 0.0
  %767 = vmatpush1.msra.mxu0 %v554
  %768 = vmatprep.subr.mxu0 0.0
  %769 = vmatpush1.msra.mxu0 %v555
  %770 = vmatprep.subr.mxu0 0.0
  %771 = vmatpush1.msra.mxu0 %v556
  %772 = vmatprep.subr.mxu0 0.0
  %773 = vmatpush1.msra.mxu0 %v557
  %774 = vmatprep.subr.mxu0 0.0
  %775 = vmatpush1.msra.mxu0 %v558
  %776 = vmatprep.subr.mxu0 0.0
  %777 = vmatpush1.msra.mxu0 %v559
  %778 = vmatprep.subr.mxu0 0.0
  %779 = vmatpush1.msra.mxu0 %v560
  %780 = vmatprep.subr.mxu0 0.0
  %781 = vmatpush1.msra.mxu0 %v561
  %782 = vmatprep.subr.mxu0 0.0
  %783 = vmatpush1.msra.mxu0 %v562
  %784 = vmatprep.subr.mxu0 0.0
  %785 = vmatpush1.msra.mxu0 %v563
  %786 = vmatprep.subr.mxu0 0.0
  %787 = vmatpush1.msra.mxu0 %v564
  %788 = vmatprep.subr.mxu0 0.0
  %789 = vmatpush1.msra.mxu0 %v565
  %790 = vmatprep.subr.mxu0 0.0
  %791 = vmatpush1.msra.mxu0 %v566
  %792 = vmatprep.subr.mxu0 0.0
  %793 = vmatpush1.msra.mxu0 %v567
  %794 = vmatprep.subr.mxu0 0.0
  %795 = vmatpush1.msra.mxu0 %v568
  %796 = vmatprep.subr.mxu0 0.0
  %797 = vmatpush1.msra.mxu0 %v569
  %798 = vmatprep.subr.mxu0 0.0
  %799 = vmatpush1.msra.mxu0 %v570
  %800 = vmatprep.subr.mxu0 0.0
  %801 = vmatpush1.msra.mxu0 %v571
  %802 = vmatprep.subr.mxu0 0.0
  %803 = vmatpush1.msra.mxu0 %v572
  %804 = vmatprep.subr.mxu0 0.0
  %805 = vmatpush1.msra.mxu0 %v573
  %806 = vmatprep.subr.mxu0 0.0
  %807 = vmatpush1.msra.mxu0 %v574
  %808 = vmatprep.subr.mxu0 0.0
  %809 = vmatpush1.msra.mxu0 %v575
  %810 = vmatprep.subr.mxu0 0.0
  %811 = vmatpush1.msra.mxu0 %v576
  %812 = vmatprep.subr.mxu0 0.0
  %813 = vmatpush1.msra.mxu0 %v577
  %814 = vmatprep.subr.mxu0 0.0
  %815 = vmatpush1.msra.mxu0 %v578
  %816 = vmatprep.subr.mxu0 0.0
  %817 = vmatpush1.msra.mxu0 %v579
  %818 = vmatprep.mubr.f32.mxu0 %v481
  %819 = vmatmul.mubr.f32.gmra.mrb[0].mxu0 %v480
  %v820 = vpop.f32.mrb[0].mxu0
  %v821 = vadd.f32 %v751, %v820
  %v822 = vpop.f32.mrb[0].mxu0
  %823 = vdwg.mxu0
  %824 = vmatprep.subr.mxu0 0.0
  %825 = vmatpush1.msra.mxu0 %v580
  %826 = vmatprep.subr.mxu0 0.0
  %827 = vmatpush1.msra.mxu0 %v581
  %828 = vmatprep.subr.mxu0 0.0
  %829 = vmatpush1.msra.mxu0 %v582
  %830 = vmatprep.subr.mxu0 0.0
  %831 = vmatpush1.msra.mxu0 %v583
  %832 = vmatprep.subr.mxu0 0.0
  %833 = vmatpush1.msra.mxu0 %v584
  %834 = vmatprep.subr.mxu0 0.0
  %835 = vmatpush1.msra.mxu0 %v585
  %836 = vmatprep.subr.mxu0 0.0
  %837 = vmatpush1.msra.mxu0 %v586
  %838 = vmatprep.subr.mxu0 0.0
  %839 = vmatpush1.msra.mxu0 %v587
  %840 = vmatprep.subr.mxu0 0.0
  %841 = vmatpush1.msra.mxu0 %v588
  %842 = vmatprep.subr.mxu0 0.0
  %843 = vmatpush1.msra.mxu0 %v589
  %844 = vmatprep.subr.mxu0 0.0
  %845 = vmatpush1.msra.mxu0 %v590
  %846 = vmatprep.subr.mxu0 0.0
  %847 = vmatpush1.msra.mxu0 %v591
  %848 = vmatprep.subr.mxu0 0.0
  %849 = vmatpush1.msra.mxu0 %v592
  %850 = vmatprep.subr.mxu0 0.0
  %851 = vmatpush1.msra.mxu0 %v593
  %852 = vmatprep.subr.mxu0 0.0
  %853 = vmatpush1.msra.mxu0 %v594
  %854 = vmatprep.subr.mxu0 0.0
  %855 = vmatpush1.msra.mxu0 %v595
  %856 = vmatprep.subr.mxu0 0.0
  %857 = vmatpush1.msra.mxu0 %v596
  %858 = vmatprep.subr.mxu0 0.0
  %859 = vmatpush1.msra.mxu0 %v597
  %860 = vmatprep.subr.mxu0 0.0
  %861 = vmatpush1.msra.mxu0 %v598
  %862 = vmatprep.subr.mxu0 0.0
  %863 = vmatpush1.msra.mxu0 %v599
  %864 = vmatprep.subr.mxu0 0.0
  %865 = vmatpush1.msra.mxu0 %v600
  %866 = vmatprep.subr.mxu0 0.0
  %867 = vmatpush1.msra.mxu0 %v601
  %868 = vmatprep.subr.mxu0 0.0
  %869 = vmatpush1.msra.mxu0 %v602
  %870 = vmatprep.subr.mxu0 0.0
  %871 = vmatpush1.msra.mxu0 %v603
  %872 = vmatprep.subr.mxu0 0.0
  %873 = vmatpush1.msra.mxu0 %v604
  %874 = vmatprep.subr.mxu0 0.0
  %875 = vmatpush1.msra.mxu0 %v605
  %876 = vmatprep.subr.mxu0 0.0
  %877 = vmatpush1.msra.mxu0 %v606
  %878 = vmatprep.subr.mxu0 0.0
  %879 = vmatpush1.msra.mxu0 %v607
  %880 = vmatprep.subr.mxu0 0.0
  %881 = vmatpush1.msra.mxu0 %v608
  %882 = vmatprep.subr.mxu0 0.0
  %883 = vmatpush1.msra.mxu0 %v609
  %884 = vmatprep.subr.mxu0 0.0
  %885 = vmatpush1.msra.mxu0 %v610
  %886 = vmatprep.subr.mxu0 0.0
  %887 = vmatpush1.msra.mxu0 %v611
  %888 = vmatprep.mubr.f32.mxu0 %v483
  %889 = vmatmul.mubr.f32.gmra.mrb[0].mxu0 %v482
  %v890 = vpop.f32.mrb[0].mxu0
  %v891 = vadd.f32 %v821, %v890
  %v892 = vpop.f32.mrb[0].mxu0
  %893 = vdwg.mxu0
  %v894 = vsub.f32 0.0, %v891
  %v895 = vmul.f32 %v894, 1.442695
  %v896 = vpow.pop %v895
  %v897 = vadd.f32 %v896, 1.0
  %v898 = vrcp.pop %v897
  %vm899 = vcmask 253952
  %900 = vst.msk [vmem:[%s5] sm:$0x1] %vm899, %v898
  // Predicated region
  $region22: #{neural_net_forward.1} parent=0 // pred_check
    _
  $region23: #{neural_net_forward.1} parent=0 // pred_check_branch
    %902 = sbr.rel (0) target = $region25
  $region24: #{neural_net_forward.1} parent=0 // pred_region
    _
  $region25: #{neural_net_forward.1} parent=0 // pred_fallthru
    _
  // Predicated region
  $region26: #{neural_net_forward.1} parent=0 // pred_check
    _
  $region27: #{neural_net_forward.1} parent=0 // pred_check_branch
    %904 = sbr.rel (0) target = $region29
  $region28: #{neural_net_forward.1} parent=0 // pred_region
    _
  $region29: #{neural_net_forward.1} parent=0 // pred_fallthru
    _

</llo_original>
